<compile_context>
chip_gen: v6e
topology: v6e:2x2x1
jax: 0.10.0
libtpu: 0.0.40
codegen_flags: <defaults>
</compile_context>

<pallas_src>
import jax
import jax.numpy as jnp
from jax.experimental import pallas as pl
from jax.experimental.pallas import tpu as pltpu

LANE = 128
SUBLANE = 8


def _round_up(x, m):
    return ((x + m - 1) // m) * m


def _make_critic_kernel(has_act, mxu_dtype):
    """Fused 3-layer MLP: 2x (matmul + bias + ReLU) + linear Q head."""

    def kernel(*refs):
        if has_act:
            (obs_ref, act_ref, w1o_ref, w1a_ref, b1_ref,
             w2_ref, b2_ref, w3t_ref, b3_ref, q_ref) = refs
        else:
            (obs_ref, w1o_ref, b1_ref,
             w2_ref, b2_ref, w3t_ref, b3_ref, q_ref) = refs

        # preprocess layer 1: h1 = relu(obs @ W1_obs [+ act @ W1_act] + b1)
        # MXU operands in mxu_dtype (bf16 by default), f32 accumulation.
        h1 = jnp.dot(obs_ref[...].astype(mxu_dtype), w1o_ref[...],
                     preferred_element_type=jnp.float32)
        if has_act:
            h1 = h1 + jnp.dot(act_ref[...].astype(mxu_dtype), w1a_ref[...],
                              preferred_element_type=jnp.float32)
        h1 = jnp.maximum(h1 + b1_ref[...], 0.0)          # f32 VPU (v5e-safe)

        # preprocess layer 2: h2 = relu(h1 @ W2 + b2)
        h2 = jnp.dot(h1.astype(mxu_dtype), w2_ref[...],
                     preferred_element_type=jnp.float32)
        h2 = jnp.maximum(h2 + b2_ref[...], 0.0)

        # Q head (out_dim == 1): f32 VPU multiply + lane reduce, stored as a
        # true (tile, 1) block -> only a few masked stores instead of a
        # 128-lane padded slab.
        q_ref[...] = (jnp.sum(h2 * w3t_ref[...], axis=1, keepdims=True)
                      + b3_ref[...])

    return kernel


def critic_forward(obs, act, params, *, tb=512, mxu_dtype=jnp.bfloat16,
                   use_pallas=None):
    """Critic forward: Q(s, a) -> (B, 1) float32.

    obs: (B, ...) array (flattened to (B, obs_dim)); act: (B, ...) or None.
    params: (w1, b1, w2, b2, w3, b3) with w1: (obs_dim[+act_dim], H1),
    w2: (H1, H2), w3: (H2, 1); biases broadcastable to (1, H).
    """
    w1, b1, w2, b2, w3, b3 = params

    obs = jnp.asarray(obs, jnp.float32)
    obs = obs.reshape(obs.shape[0], -1)                  # flatten_input=True
    if act is not None:
        act = jnp.asarray(act, jnp.float32)
        act = act.reshape(act.shape[0], -1)

    B, obs_dim = obs.shape
    act_dim = 0 if act is None else act.shape[1]
    in_dim = obs_dim + act_dim
    H1, H2 = w1.shape[1], w2.shape[1]
    assert w1.shape[0] == in_dim and w3.shape == (H2, 1)

    if use_pallas is None:
        # Tiny batches are dispatch-overhead dominated: fused XLA dots win.
        use_pallas = B >= 64
    if not use_pallas:
        x = obs if act is None else jnp.concatenate([obs, act], axis=1)
        h1 = jnp.maximum(x @ w1 + b1.reshape(1, -1), 0.0)
        h2 = jnp.maximum(h1 @ w2 + b2.reshape(1, -1), 0.0)
        return h2 @ w3 + b3.reshape(1, 1)

    # Pad only the hidden dims to the 128-lane width (exact: padded rows/cols
    # are zero).  Input / output feature dims are left unpadded.
    h1_p = _round_up(H1, LANE)
    h2_p = _round_up(H2, LANE)

    w1_p = jnp.pad(w1.astype(jnp.float32),
                   ((0, 0), (0, h1_p - H1))).astype(mxu_dtype)
    w1o = w1_p[:obs_dim]
    w1a = w1_p[obs_dim:] if act is not None else None
    b1_p = jnp.pad(b1.reshape(1, -1).astype(jnp.float32),
                   ((0, 0), (0, h1_p - H1)))
    w2_p = jnp.pad(w2.astype(jnp.float32),
                   ((0, h1_p - H1), (0, h2_p - H2))).astype(mxu_dtype)
    b2_p = jnp.pad(b2.reshape(1, -1).astype(jnp.float32),
                   ((0, 0), (0, h2_p - H2)))
    # Final head stays f32 (VPU multiply + XLU reduce, not MXU).
    w3t = jnp.pad(w3.reshape(1, H2).astype(jnp.float32),
                  ((0, 0), (0, h2_p - H2)))
    b3_p = b3.reshape(1, 1).astype(jnp.float32)

    # Batch tile: as large as the VMEM budget allows (double-buffered
    # activation/output blocks + f32 intermediates + double-buffered weights),
    # conservative w.r.t. v7x's 64 MiB VMEM / 32 MiB scoped default.
    weight_bytes = 2 * sum(int(a.size) * a.dtype.itemsize
                           for a in (w1_p, b1_p, w2_p, b2_p, w3t, b3_p))
    budget = 24 * 1024 * 1024 - weight_bytes
    per_row_bytes = 4 * (2 * (in_dim + 1) + h1_p + h2_p)
    max_tile = max(SUBLANE,
                   (max(budget, 0) // per_row_bytes) // SUBLANE * SUBLANE)
    tile = min(_round_up(tb, SUBLANE), max_tile)

    if B <= tile:
        tile = B                      # single block: block dims == array dims
        n_tiles = 1
        B_pad = B
    else:
        n_tiles = int(pl.cdiv(B, tile))
        B_pad = n_tiles * tile
        if B_pad != B:                # zero-pad batch rows only (never features)
            obs = jnp.pad(obs, ((0, B_pad - B), (0, 0)))
            if act is not None:
                act = jnp.pad(act, ((0, B_pad - B), (0, 0)))

    def _const_spec(shape):
        # Whole (small) parameter tensor resident in VMEM at every grid step.
        # TODO(synk): pipeline_mode=pl.Buffered(1) would halve weight VMEM
        # residency for large H; negligible at H <= 128 so omitted here.
        return pl.BlockSpec(shape, lambda i: (0, 0))

    operands = [(obs, pl.BlockSpec((tile, obs_dim), lambda i: (i, 0)))]
    if act is not None:
        operands.append((act, pl.BlockSpec((tile, act_dim), lambda i: (i, 0))))
    operands.append((w1o, _const_spec(w1o.shape)))
    if act is not None:
        operands.append((w1a, _const_spec(w1a.shape)))
    operands += [(b1_p, _const_spec(b1_p.shape)),
                 (w2_p, _const_spec(w2_p.shape)),
                 (b2_p, _const_spec(b2_p.shape)),
                 (w3t, _const_spec(w3t.shape)),
                 (b3_p, _const_spec(b3_p.shape))]
    args, in_specs = zip(*operands)

    q = pl.pallas_call(
        _make_critic_kernel(act is not None, mxu_dtype),
        out_shape=jax.ShapeDtypeStruct((B_pad, 1), jnp.float32),
        grid=(n_tiles,),
        in_specs=list(in_specs),
        out_specs=pl.BlockSpec((tile, 1), lambda i: (i, 0)),
        compiler_params=pltpu.CompilerParams(
            # Batch tiles are fully independent -> always "parallel" so v7x's
            # two TensorCores share the grid; measured no-op on v5e/v6e.
            dimension_semantics=("parallel",)),
    )(*args)

    return q[:B] if B_pad != B else q


def make_params(key, in_dim, h1, h2):
    ks = jax.random.split(key, 6)

    def lin(k, fan_in, fan_out):
        bound = 1.0 / jnp.sqrt(fan_in)
        return jax.random.uniform(k, (fan_in, fan_out), jnp.float32, -bound, bound)

    w1 = lin(ks[0], in_dim, h1)
    b1 = jax.random.uniform(ks[1], (1, h1), jnp.float32, -0.1, 0.1)
    w2 = lin(ks[2], h1, h2)
    b2 = jax.random.uniform(ks[3], (1, h2), jnp.float32, -0.1, 0.1)
    w3 = lin(ks[4], h2, 1)
    b3 = jax.random.uniform(ks[5], (1, 1), jnp.float32, -0.1, 0.1)
    return (w1, b1, w2, b2, w3, b3)


def reference_forward(obs, act, params, mxu_dtype=jnp.float32):
    """Pure-JAX reference.  mxu_dtype applies the same operand rounding as the
    kernel's MXU path (bf16 x bf16 products are exact in f32, so this matches
    the kernel up to f32 accumulation-order noise)."""
    w1, b1, w2, b2, w3, b3 = params
    obs = obs.reshape(obs.shape[0], -1)
    x = obs if act is None else jnp.concatenate(
        [obs, act.reshape(act.shape[0], -1)], axis=1)

    def mm(a, w):
        return jnp.dot(a.astype(mxu_dtype).astype(jnp.float32),
                       w.astype(mxu_dtype).astype(jnp.float32),
                       preferred_element_type=jnp.float32)

    h1 = jnp.maximum(mm(x, w1) + b1.reshape(1, -1), 0.0)
    h2 = jnp.maximum(mm(h1, w2) + b2.reshape(1, -1), 0.0)
    return h2 @ w3 + b3.reshape(1, 1)          # final head is f32 in the kernel too


if __name__ == "__main__":
    key = jax.random.PRNGKey(0)
    kp, ko, ka = jax.random.split(key, 3)

    batch, obs_dim, act_dim, h1, h2 = 16, 16, 4, 32, 32
    params = make_params(kp, obs_dim + act_dim, h1, h2)
    obs = jax.random.normal(ko, (batch, obs_dim), jnp.float32)
    act = jax.random.normal(ka, (batch, act_dim), jnp.float32)

    # Force the Pallas path (the auto policy routes B=16 to plain XLA dots).
    q = jax.block_until_ready(critic_forward(obs, act, params, use_pallas=True))
    q_ref = reference_forward(obs, act, params, mxu_dtype=jnp.bfloat16)
    assert q.shape == (batch, 1)
    assert jnp.allclose(q, q_ref, atol=1e-3, rtol=1e-3), float(jnp.max(jnp.abs(q - q_ref)))

    # act=None path (obs-only value head), also exercised through the kernel.
    params_v = make_params(kp, obs_dim, h1, h2)
    v = jax.block_until_ready(critic_forward(obs, None, params_v, use_pallas=True))
    v_ref = reference_forward(obs, None, params_v, mxu_dtype=jnp.bfloat16)
    assert v.shape == (batch, 1)
    assert jnp.allclose(v, v_ref, atol=1e-3, rtol=1e-3), float(jnp.max(jnp.abs(v - v_ref)))

    print("KERNEL_OK")
</pallas_src>

<mosaic_0001>
module attributes {stable_mosaic.version = 11 : i64} {
  func.func @kernel(%arg0: i32, %arg1: memref<16x16xf32, #tpu.memory_space<vmem>>, %arg2: memref<16x4xf32, #tpu.memory_space<vmem>>, %arg3: memref<16x128xbf16, #tpu.memory_space<vmem>>, %arg4: memref<4x128xbf16, #tpu.memory_space<vmem>>, %arg5: memref<1x128xf32, #tpu.memory_space<vmem>>, %arg6: memref<128x128xbf16, #tpu.memory_space<vmem>>, %arg7: memref<1x128xf32, #tpu.memory_space<vmem>>, %arg8: memref<1x128xf32, #tpu.memory_space<vmem>>, %arg9: memref<1x1xf32, #tpu.memory_space<vmem>>, %arg10: memref<16x1xf32, #tpu.memory_space<vmem>>) attributes {dimension_semantics = [#tpu.dimension_semantics<parallel>], iteration_bounds = array<i64: 1>, scalar_prefetch = 0 : i64, scratch_operands = 0 : i64, tpu.core_type = #tpu.core_type<tc>, window_params = [{transform_indices = @transform_0, window_bounds = array<i64: 16, 16>}, {transform_indices = @transform_1, window_bounds = array<i64: 16, 4>}, {pipeline_mode = #tpu.pipeline_mode<synchronous>, transform_indices = @transform_2, window_bounds = array<i64: 16, 128>}, {pipeline_mode = #tpu.pipeline_mode<synchronous>, transform_indices = @transform_3, window_bounds = array<i64: 4, 128>}, {pipeline_mode = #tpu.pipeline_mode<synchronous>, transform_indices = @transform_4, window_bounds = array<i64: 1, 128>}, {pipeline_mode = #tpu.pipeline_mode<synchronous>, transform_indices = @transform_5, window_bounds = array<i64: 128, 128>}, {pipeline_mode = #tpu.pipeline_mode<synchronous>, transform_indices = @transform_6, window_bounds = array<i64: 1, 128>}, {pipeline_mode = #tpu.pipeline_mode<synchronous>, transform_indices = @transform_7, window_bounds = array<i64: 1, 128>}, {pipeline_mode = #tpu.pipeline_mode<synchronous>, transform_indices = @transform_8, window_bounds = array<i64: 1, 1>}, {transform_indices = @transform_9, window_bounds = array<i64: 16, 1>}]} {
    %c0 = arith.constant 0 : index
    %c0_0 = arith.constant 0 : index
    %0 = vector.load %arg1[%c0, %c0_0] : memref<16x16xf32, #tpu.memory_space<vmem>>, vector<16x16xf32>
    %1 = arith.truncf %0 : vector<16x16xf32> to vector<16x16xbf16>
    %c0_1 = arith.constant 0 : index
    %c0_2 = arith.constant 0 : index
    %2 = vector.load %arg3[%c0_1, %c0_2] : memref<16x128xbf16, #tpu.memory_space<vmem>>, vector<16x128xbf16>
    %cst = arith.constant dense<0.000000e+00> : vector<16x128xf32>
    %3 = tpu.matmul %1, %2, %cst {dimension_numbers = #tpu.dot_dimension_numbers<[1], [0], [0], [1], [0, 0, 1, 1], [], []>} : vector<16x16xbf16>, vector<16x128xbf16>, vector<16x128xf32> -> vector<16x128xf32>
    %c0_3 = arith.constant 0 : index
    %c0_4 = arith.constant 0 : index
    %4 = vector.load %arg2[%c0_3, %c0_4] : memref<16x4xf32, #tpu.memory_space<vmem>>, vector<16x4xf32>
    %5 = arith.truncf %4 : vector<16x4xf32> to vector<16x4xbf16>
    %c0_5 = arith.constant 0 : index
    %c0_6 = arith.constant 0 : index
    %6 = vector.load %arg4[%c0_5, %c0_6] : memref<4x128xbf16, #tpu.memory_space<vmem>>, vector<4x128xbf16>
    %cst_7 = arith.constant dense<0.000000e+00> : vector<16x128xf32>
    %7 = tpu.matmul %5, %6, %cst_7 {dimension_numbers = #tpu.dot_dimension_numbers<[1], [0], [0], [1], [0, 0, 1, 1], [], []>} : vector<16x4xbf16>, vector<4x128xbf16>, vector<16x128xf32> -> vector<16x128xf32>
    %8 = arith.addf %3, %7 : vector<16x128xf32>
    %c0_8 = arith.constant 0 : index
    %c0_9 = arith.constant 0 : index
    %9 = vector.load %arg5[%c0_8, %c0_9] : memref<1x128xf32, #tpu.memory_space<vmem>>, vector<1x128xf32>
    %10 = vector.broadcast %9 : vector<1x128xf32> to vector<16x128xf32>
    %11 = arith.addf %8, %10 : vector<16x128xf32>
    %cst_10 = arith.constant 0.000000e+00 : f32
    %12 = vector.broadcast %cst_10 : f32 to vector<16x128xf32>
    %13 = arith.maximumf %11, %12 : vector<16x128xf32>
    %14 = arith.truncf %13 : vector<16x128xf32> to vector<16x128xbf16>
    %c0_11 = arith.constant 0 : index
    %c0_12 = arith.constant 0 : index
    %15 = vector.load %arg6[%c0_11, %c0_12] : memref<128x128xbf16, #tpu.memory_space<vmem>>, vector<128x128xbf16>
    %cst_13 = arith.constant dense<0.000000e+00> : vector<16x128xf32>
    %16 = tpu.matmul %14, %15, %cst_13 {dimension_numbers = #tpu.dot_dimension_numbers<[1], [0], [0], [1], [0, 0, 1, 1], [], []>} : vector<16x128xbf16>, vector<128x128xbf16>, vector<16x128xf32> -> vector<16x128xf32>
    %c0_14 = arith.constant 0 : index
    %c0_15 = arith.constant 0 : index
    %17 = vector.load %arg7[%c0_14, %c0_15] : memref<1x128xf32, #tpu.memory_space<vmem>>, vector<1x128xf32>
    %18 = vector.broadcast %17 : vector<1x128xf32> to vector<16x128xf32>
    %19 = arith.addf %16, %18 : vector<16x128xf32>
    %cst_16 = arith.constant 0.000000e+00 : f32
    %20 = vector.broadcast %cst_16 : f32 to vector<16x128xf32>
    %21 = arith.maximumf %19, %20 : vector<16x128xf32>
    %c0_17 = arith.constant 0 : index
    %c0_18 = arith.constant 0 : index
    %22 = vector.load %arg8[%c0_17, %c0_18] : memref<1x128xf32, #tpu.memory_space<vmem>>, vector<1x128xf32>
    %23 = vector.broadcast %22 : vector<1x128xf32> to vector<16x128xf32>
    %24 = arith.mulf %21, %23 : vector<16x128xf32>
    %cst_19 = arith.constant dense<0.000000e+00> : vector<16xf32>
    %25 = vector.multi_reduction <add>, %24, %cst_19 [1] : vector<16x128xf32> to vector<16xf32>
    %26 = vector.shape_cast %25 : vector<16xf32> to vector<16x1xf32>
    %c0_20 = arith.constant 0 : index
    %c0_21 = arith.constant 0 : index
    %27 = vector.load %arg9[%c0_20, %c0_21] : memref<1x1xf32, #tpu.memory_space<vmem>>, vector<1x1xf32>
    %28 = vector.broadcast %27 : vector<1x1xf32> to vector<16x1xf32>
    %29 = arith.addf %26, %28 : vector<16x1xf32>
    %c0_22 = arith.constant 0 : index
    %c0_23 = arith.constant 0 : index
    %30 = vector.load %arg10[%c0_22, %c0_23] : memref<16x1xf32, #tpu.memory_space<vmem>>, vector<16x1xf32>
    tpu.vector_store %arg10[%c0_22, %c0_23], %29 {strides = array<i32>} : memref<16x1xf32, #tpu.memory_space<vmem>>, vector<16x1xf32>,
    return
  }
  func.func @transform_0(%arg0: i32) -> (i32, i32) {
    %c0_i32 = arith.constant 0 : i32
    %c0_i32_0 = arith.constant 0 : i32
    return %arg0, %c0_i32 : i32, i32
  }
  func.func @transform_1(%arg0: i32) -> (i32, i32) {
    %c0_i32 = arith.constant 0 : i32
    %c0_i32_0 = arith.constant 0 : i32
    return %arg0, %c0_i32 : i32, i32
  }
  func.func @transform_2(%arg0: i32) -> (i32, i32) {
    %c0_i32 = arith.constant 0 : i32
    %c0_i32_0 = arith.constant 0 : i32
    %c0_i32_1 = arith.constant 0 : i32
    return %c0_i32, %c0_i32_0 : i32, i32
  }
  func.func @transform_3(%arg0: i32) -> (i32, i32) {
    %c0_i32 = arith.constant 0 : i32
    %c0_i32_0 = arith.constant 0 : i32
    %c0_i32_1 = arith.constant 0 : i32
    return %c0_i32, %c0_i32_0 : i32, i32
  }
  func.func @transform_4(%arg0: i32) -> (i32, i32) {
    %c0_i32 = arith.constant 0 : i32
    %c0_i32_0 = arith.constant 0 : i32
    %c0_i32_1 = arith.constant 0 : i32
    return %c0_i32, %c0_i32_0 : i32, i32
  }
  func.func @transform_5(%arg0: i32) -> (i32, i32) {
    %c0_i32 = arith.constant 0 : i32
    %c0_i32_0 = arith.constant 0 : i32
    %c0_i32_1 = arith.constant 0 : i32
    return %c0_i32, %c0_i32_0 : i32, i32
  }
  func.func @transform_6(%arg0: i32) -> (i32, i32) {
    %c0_i32 = arith.constant 0 : i32
    %c0_i32_0 = arith.constant 0 : i32
    %c0_i32_1 = arith.constant 0 : i32
    return %c0_i32, %c0_i32_0 : i32, i32
  }
  func.func @transform_7(%arg0: i32) -> (i32, i32) {
    %c0_i32 = arith.constant 0 : i32
    %c0_i32_0 = arith.constant 0 : i32
    %c0_i32_1 = arith.constant 0 : i32
    return %c0_i32, %c0_i32_0 : i32, i32
  }
  func.func @transform_8(%arg0: i32) -> (i32, i32) {
    %c0_i32 = arith.constant 0 : i32
    %c0_i32_0 = arith.constant 0 : i32
    %c0_i32_1 = arith.constant 0 : i32
    return %c0_i32, %c0_i32_0 : i32, i32
  }
  func.func @transform_9(%arg0: i32) -> (i32, i32) {
    %c0_i32 = arith.constant 0 : i32
    %c0_i32_0 = arith.constant 0 : i32
    return %arg0, %c0_i32 : i32, i32
  }
}

</mosaic_0001>

<llo_original>
// kernel: tpu_custom_call.1
$region0: #{tpu_custom_call.1}
  #allocation0 [shape = 'u32[]', space=smem, size = 0x4, offset = 0x4, fixed_abs, tag = 'smem constant byte address 0x4 - core index']
  #allocation1 [shape = 'u32[144,128]{1,0:T(1,128)}', space=vmem, size = 0x12000, scoped, tag = 'internal scratch']
  #allocation2 [shape = 'f32[1,1]{1,0:T(1,128)S(1)}', space=vmem, size = 0x200, scoped, tag = 'scoped memory for tpu_custom_call.1']
  %s0 = inlined_call_operand.vmem [shape: f32[16,16], index: 0, kind: input, shape index: {}]
  %s1 = inlined_call_operand.vmem [shape: f32[16,4], index: 1, kind: input, shape index: {}]
  %s2 = inlined_call_operand.vmem [shape: bf16[16,128], index: 2, kind: input, shape index: {}]
  %s3 = inlined_call_operand.vmem [shape: bf16[4,128], index: 3, kind: input, shape index: {}]
  %s4 = inlined_call_operand.vmem [shape: f32[1,128], index: 4, kind: input, shape index: {}]
  %s5 = inlined_call_operand.hbm [shape: bf16[128,128], index: 5, kind: input, shape index: {}]
  %s6 = inlined_call_operand.vmem [shape: f32[1,128], index: 6, kind: input, shape index: {}]
  %s7 = inlined_call_operand.vmem [shape: f32[1,128], index: 7, kind: input, shape index: {}]
  %s8 = inlined_call_operand.<no memory space> [shape: f32[1,1], index: 8, kind: input, shape index: {}]
  %s9 = inlined_call_operand.vmem [shape: f32[16,1], index: 9, kind: output, shape index: {}]
  %s10 = sld [smem:[#allocation0]]
  $region50: #{tpu_custom_call.1} parent=0
    _
  %s12 = ssub.s32 1, %s10
  %s13 = scalar_select 0, %s12, %s10
  %v14 = vstv %s8
  %15 = vst [vmem:[#allocation2] sm:$0x1] %v14
  $region1: #{tpu_custom_call.1} parent=0
    #allocation3 [shape = 'u8[32768]{0}', space=vmem, size = 0x8000, scoped, tag = 'input window, operand 5, single buffered']
    #allocation4 [shape = 's32[1]{0}', space=sflag, size = 0x4, scoped, tag = 'scoped memory for tpu_custom_call.1']
    %16 = vsyncpa [#allocation4], 0
    // Predicated region
    $region2: #{tpu_custom_call.1} parent=1 // pred_check
      _
    $region3: #{tpu_custom_call.1} parent=1 // pred_check_branch
      %18 = sbr.rel (0) target = $region5
    $region4: #{tpu_custom_call.1} parent=1 // pred_region
      _
    $region5: #{tpu_custom_call.1} parent=1 // pred_fallthru
      _
    // Predicated region
    $region6: #{tpu_custom_call.1} parent=1 // pred_check
      _
    $region7: #{tpu_custom_call.1} parent=1 // pred_check_branch
      %20 = sbr.rel (0) target = $region9
    $region8: #{tpu_custom_call.1} parent=1 // pred_region
      _
    $region9: #{tpu_custom_call.1} parent=1 // pred_fallthru
      _
    // Predicated region
    $region10: #{tpu_custom_call.1} parent=1 // pred_check
      _
    $region11: #{tpu_custom_call.1} parent=1 // pred_check_branch
      %22 = sbr.rel (0) target = $region13
    $region12: #{tpu_custom_call.1} parent=1 // pred_region
      _
    $region13: #{tpu_custom_call.1} parent=1 // pred_fallthru
      _
    // Predicated region
    $region14: #{tpu_custom_call.1} parent=1 // pred_check
      _
    $region15: #{tpu_custom_call.1} parent=1 // pred_check_branch
      %24 = sbr.rel (0) target = $region17
    $region16: #{tpu_custom_call.1} parent=1 // pred_region
      _
    $region17: #{tpu_custom_call.1} parent=1 // pred_fallthru
      _
    // Predicated region
    $region18: #{tpu_custom_call.1} parent=1 // pred_check
      _
    $region19: #{tpu_custom_call.1} parent=1 // pred_check_branch
      %26 = sbr.rel (0) target = $region21
    $region20: #{tpu_custom_call.1} parent=1 // pred_region
      _
    $region21: #{tpu_custom_call.1} parent=1 // pred_fallthru
      _
    // Predicated region
    $region22: #{tpu_custom_call.1} parent=1 // pred_check
      _
    $region23: #{tpu_custom_call.1} parent=1 // pred_check_branch
      %28 = sbr.rel (0) target = $region25
    $region24: #{tpu_custom_call.1} parent=1 // pred_region
      %s30 = ssub.s32 1024, 1024
      %31 = vsyncadd [#allocation4], %s30
      %s32 = sshll.u32 [#allocation3], 4
      %s33 = int_to_ptr.vmem [resolvable:$true] %s32
      %38 = dma.hbm_to_vmem [thread:$0]  %s5, 1024, %s33, [#allocation4], 64, 64, 4
    $region25: #{tpu_custom_call.1} parent=1 // pred_fallthru
      _
    // Predicated region
    $region26: #{tpu_custom_call.1} parent=1 // pred_check
      _
    $region27: #{tpu_custom_call.1} parent=1 // pred_check_branch
      %40 = sbr.rel (0) target = $region29
    $region28: #{tpu_custom_call.1} parent=1 // pred_region
      _
    $region29: #{tpu_custom_call.1} parent=1 // pred_fallthru
      _
    // Predicated region
    $region30: #{tpu_custom_call.1} parent=1 // pred_check
      _
    $region31: #{tpu_custom_call.1} parent=1 // pred_check_branch
      %42 = sbr.rel (0) target = $region33
    $region32: #{tpu_custom_call.1} parent=1 // pred_region
      _
    $region33: #{tpu_custom_call.1} parent=1 // pred_fallthru
      _
    // Predicated region
    $region34: #{tpu_custom_call.1} parent=1 // pred_check
      _
    $region35: #{tpu_custom_call.1} parent=1 // pred_check_branch
      %44 = sbr.rel (0) target = $region37
    $region36: #{tpu_custom_call.1} parent=1 // pred_region
      _
    $region37: #{tpu_custom_call.1} parent=1 // pred_fallthru
      _
    // Predicated region
    $region38: #{tpu_custom_call.1} parent=1 // pred_check
      _
    $region39: #{tpu_custom_call.1} parent=1 // pred_check_branch
      %46 = sbr.rel (0) target = $region41
    $region40: #{tpu_custom_call.1} parent=1 // pred_region
      %47 = dma.done [#allocation4], 1024
    $region41: #{tpu_custom_call.1} parent=1 // pred_fallthru
      _
    %v49 = vld [vmem:[%s0] sm:$0xff]
    %v50 = vld [vmem:[%s0 + $0x8] sm:$0xff]
    %v51 = vpack.c.bf16 %v50, %v49
    %v52 = vld [vmem:[%s2] sm:$0xf]
    %v53 = vld [vmem:[%s2 + $0x4] sm:$0xf]
    %v54 = vld [vmem:[%s1] sm:$0xff]
    %v55 = vld [vmem:[%s1 + $0x8] sm:$0xff]
    %v56 = vpack.c.bf16 %v55, %v54
    %v57 = vld [vmem:[%s3] sm:$0x3]
    %vm58 = vcmask 31744
    %v60 = vsel %vm58, %v56, 0
    %vm62 = vcmask 1041408
    %v64 = vsel %vm62, %v57, 0
    %66 = vmatprep.subr.bf16.mxu0 0
    %67 = vmatpush1.bf16.msra.mxu0 0
    %68 = vmatprep.subr.bf16.mxu0 0
    %69 = vmatpush1.bf16.msra.mxu0 0
    %70 = vmatprep.subr.bf16.mxu0 0
    %71 = vmatpush1.bf16.msra.mxu0 0
    %72 = vmatprep.subr.bf16.mxu0 0
    %73 = vmatpush1.bf16.msra.mxu0 0
    %74 = vmatprep.subr.bf16.mxu0 0
    %75 = vmatpush1.bf16.msra.mxu0 0
    %76 = vmatprep.subr.bf16.mxu0 0
    %77 = vmatpush1.bf16.msra.mxu0 0
    %78 = vmatprep.subr.bf16.mxu0 0
    %79 = vmatpush1.bf16.msra.mxu0 0
    %80 = vmatprep.subr.bf16.mxu0 0
    %81 = vmatpush1.bf16.msra.mxu0 %v64
    %82 = vmatprep.subr.bf16.mxu0 0
    %83 = vmatpush2.bf16.msra.mxu0 0
    %84 = vmatprep.subr.bf16.mxu0 0
    %85 = vmatpush2.bf16.msra.mxu0 0
    %86 = vmatprep.subr.bf16.mxu0 0
    %87 = vmatpush2.bf16.msra.mxu0 0
    %88 = vmatprep.subr.bf16.mxu0 0
    %89 = vmatpush2.bf16.msra.mxu0 0
    %90 = vmatprep.subr.bf16.mxu0 0
    %91 = vmatpush2.bf16.msra.mxu0 0
    %92 = vmatprep.subr.bf16.mxu0 0
    %93 = vmatpush2.bf16.msra.mxu0 0
    %94 = vmatprep.subr.bf16.mxu0 0
    %95 = vmatpush2.bf16.msra.mxu0 0
    %96 = vmatprep.subr.bf16.mxu0 0
    %97 = vmatpush2.bf16.msra.mxu0 0
    %98 = vmatprep.mubr.bf16.mxu0 0
    %99 = vmatmul.mubr.bf16.gmra.mxu0 %v60
    %v100 = vpop.f32.mrf.mxu0
    %v101 = vadd.f32 0.0, %v100
    %v102 = vpop.f32.mrf.mxu0
    %v103 = vpop.f32.mrf.mxu0
    %v104 = vadd.f32 0.0, %v103
    %v105 = vpop.f32.mrf.mxu0
    %106 = vdwg.mxu0
    %v109 = vunpack.c.l.b16 %v52
    %v110 = vunpack.c.l.b16 %v53
    %v111 = vpack.c.b16 %v110, %v109
    %vm113 = vcmask 130048
    %v115 = vsel %vm113, %v51, 0
    %117 = vmatprep.subr.bf16.mxu0 0
    %118 = vmatpush1.bf16.msra.mxu0 0
    %119 = vmatprep.subr.bf16.mxu0 0
    %120 = vmatpush1.bf16.msra.mxu0 0
    %121 = vmatprep.subr.bf16.mxu0 0
    %122 = vmatpush1.bf16.msra.mxu0 0
    %123 = vmatprep.subr.bf16.mxu0 0
    %124 = vmatpush1.bf16.msra.mxu0 0
    %125 = vmatprep.subr.bf16.mxu0 0
    %126 = vmatpush1.bf16.msra.mxu0 0
    %127 = vmatprep.subr.bf16.mxu0 0
    %128 = vmatpush1.bf16.msra.mxu0 0
    %129 = vmatprep.subr.bf16.mxu0 0
    %130 = vmatpush1.bf16.msra.mxu0 0
    %131 = vmatprep.subr.bf16.mxu0 0
    %132 = vmatpush1.bf16.msra.mxu0 %v111
    %133 = vmatprep.subr.bf16.mxu0 0
    %134 = vmatpush2.bf16.msra.mxu0 0
    %135 = vmatprep.subr.bf16.mxu0 0
    %136 = vmatpush2.bf16.msra.mxu0 0
    %137 = vmatprep.subr.bf16.mxu0 0
    %138 = vmatpush2.bf16.msra.mxu0 0
    %139 = vmatprep.subr.bf16.mxu0 0
    %140 = vmatpush2.bf16.msra.mxu0 0
    %141 = vmatprep.subr.bf16.mxu0 0
    %142 = vmatpush2.bf16.msra.mxu0 0
    %143 = vmatprep.subr.bf16.mxu0 0
    %144 = vmatpush2.bf16.msra.mxu0 0
    %145 = vmatprep.subr.bf16.mxu0 0
    %146 = vmatpush2.bf16.msra.mxu0 0
    %147 = vmatprep.subr.bf16.mxu0 0
    %148 = vmatpush2.bf16.msra.mxu0 0
    %149 = vmatprep.mubr.bf16.mxu0 0
    %150 = vmatmul.mubr.bf16.gmra.mxu0 %v115
    %v151 = vpop.f32.mrf.mxu0
    %v152 = vadd.f32 %v101, %v151
    %v153 = vpop.f32.mrf.mxu0
    %v154 = vpop.f32.mrf.mxu0
    %v155 = vadd.f32 %v104, %v154
    %v156 = vpop.f32.mrf.mxu0
    %157 = vdwg.mxu0
    %v158 = vld [vmem:[%s4] sm:$0x1]
    %v160 = vlaneseq
    %v161 = vshrl.u32 %v160, 7
    %v162 = vsub.s32 0, %v161
    %v163 = vrot.slane %v158, %v162
    %v165 = vadd.f32 %v152, %v163
    %v166 = vadd.f32 %v155, %v163
    %v167 = vmax.f32 %v165, 0.0
    %v168 = vmax.f32 %v166, 0.0
    %v169 = vpack.c.bf16 %v168, %v167
    %v170 = vld [vmem:[#allocation3] sm:$0xf]
    %v171 = vld [vmem:[#allocation3 + $0x4] sm:$0xf]
    %v172 = vld [vmem:[#allocation3 + $0x8] sm:$0xf]
    %v173 = vld [vmem:[#allocation3 + $0xc] sm:$0xf]
    %v174 = vld [vmem:[#allocation3 + $0x10] sm:$0xf]
    %v175 = vld [vmem:[#allocation3 + $0x14] sm:$0xf]
    %v176 = vld [vmem:[#allocation3 + $0x18] sm:$0xf]
    %v177 = vld [vmem:[#allocation3 + $0x1c] sm:$0xf]
    %v178 = vld [vmem:[#allocation3 + $0x20] sm:$0xf]
    %v179 = vld [vmem:[#allocation3 + $0x24] sm:$0xf]
    %v180 = vld [vmem:[#allocation3 + $0x28] sm:$0xf]
    %v181 = vld [vmem:[#allocation3 + $0x2c] sm:$0xf]
    %v182 = vld [vmem:[#allocation3 + $0x30] sm:$0xf]
    %v183 = vld [vmem:[#allocation3 + $0x34] sm:$0xf]
    %v184 = vld [vmem:[#allocation3 + $0x38] sm:$0xf]
    %v185 = vld [vmem:[#allocation3 + $0x3c] sm:$0xf]
    %v186 = vld [vmem:[%s6] sm:$0x1]
    %v188 = vlaneseq
    %v189 = vshrl.u32 %v188, 7
    %v190 = vsub.s32 0, %v189
    %v191 = vrot.slane %v186, %v190
    %v209 = vunpack.c.l.b16 %v170
    %v210 = vunpack.c.l.b16 %v171
    %v211 = vunpack.c.l.b16 %v172
    %v212 = vunpack.c.l.b16 %v173
    %v213 = vunpack.c.l.b16 %v174
    %v214 = vunpack.c.l.b16 %v175
    %v215 = vunpack.c.l.b16 %v176
    %v216 = vunpack.c.l.b16 %v177
    %v217 = vunpack.c.l.b16 %v178
    %v218 = vunpack.c.l.b16 %v179
    %v219 = vunpack.c.l.b16 %v180
    %v220 = vunpack.c.l.b16 %v181
    %v221 = vunpack.c.l.b16 %v182
    %v222 = vunpack.c.l.b16 %v183
    %v223 = vunpack.c.l.b16 %v184
    %v224 = vunpack.c.l.b16 %v185
    %v225 = vpack.c.b16 %v210, %v209
    %v226 = vpack.c.b16 %v212, %v211
    %v227 = vpack.c.b16 %v214, %v213
    %v228 = vpack.c.b16 %v216, %v215
    %v229 = vpack.c.b16 %v218, %v217
    %v230 = vpack.c.b16 %v220, %v219
    %v231 = vpack.c.b16 %v222, %v221
    %v232 = vpack.c.b16 %v224, %v223
    %241 = vmatprep.subr.bf16.mxu0 0
    %242 = vmatpush1.bf16.msra.mxu0 %v232
    %243 = vmatprep.subr.bf16.mxu0 0
    %244 = vmatpush1.bf16.msra.mxu0 %v231
    %245 = vmatprep.subr.bf16.mxu0 0
    %246 = vmatpush1.bf16.msra.mxu0 %v230
    %247 = vmatprep.subr.bf16.mxu0 0
    %248 = vmatpush1.bf16.msra.mxu0 %v229
    %249 = vmatprep.subr.bf16.mxu0 0
    %250 = vmatpush1.bf16.msra.mxu0 %v228
    %251 = vmatprep.subr.bf16.mxu0 0
    %252 = vmatpush1.bf16.msra.mxu0 %v227
    %253 = vmatprep.subr.bf16.mxu0 0
    %254 = vmatpush1.bf16.msra.mxu0 %v226
    %255 = vmatprep.subr.bf16.mxu0 0
    %256 = vmatpush1.bf16.msra.mxu0 %v225
    %257 = vmatprep.subr.bf16.mxu0 0
    %258 = vmatpush2.bf16.msra.mxu0 0
    %259 = vmatprep.subr.bf16.mxu0 0
    %260 = vmatpush2.bf16.msra.mxu0 0
    %261 = vmatprep.subr.bf16.mxu0 0
    %262 = vmatpush2.bf16.msra.mxu0 0
    %263 = vmatprep.subr.bf16.mxu0 0
    %264 = vmatpush2.bf16.msra.mxu0 0
    %265 = vmatprep.subr.bf16.mxu0 0
    %266 = vmatpush2.bf16.msra.mxu0 0
    %267 = vmatprep.subr.bf16.mxu0 0
    %268 = vmatpush2.bf16.msra.mxu0 0
    %269 = vmatprep.subr.bf16.mxu0 0
    %270 = vmatpush2.bf16.msra.mxu0 0
    %271 = vmatprep.subr.bf16.mxu0 0
    %272 = vmatpush2.bf16.msra.mxu0 0
    %273 = vmatprep.mubr.bf16.mxu0 0
    %274 = vmatmul.mubr.bf16.gmra.mxu0 %v169
    %v275 = vpop.f32.mrf.mxu0
    %v276 = vadd.f32 %v191, %v275
    %v277 = vpop.f32.mrf.mxu0
    %v278 = vpop.f32.mrf.mxu0
    %v279 = vadd.f32 %v191, %v278
    %v280 = vpop.f32.mrf.mxu0
    %281 = vdwg.mxu0
    %v282 = vmax.f32 %v276, 0.0
    %v283 = vmax.f32 %v279, 0.0
    %v284 = vld [vmem:[%s7] sm:$0x1]
    %v286 = vlaneseq
    %v287 = vshrl.u32 %v286, 7
    %v288 = vsub.s32 0, %v287
    %v289 = vrot.slane %v284, %v288
    %v291 = vmul.f32 %v282, %v289
    %v292 = vmul.f32 %v283, %v289
    %293 = vadd.xlane.f32.xlu0 %v291
    %v294 = vpop.xlane.xlu0 %293
    %295 = vadd.xlane.f32.xlu0 %v292
    %v296 = vpop.xlane.xlu0 %295
    %v297 = vld [vmem:[#allocation2] sm:$0x1]
    %v299 = vlaneseq
    %v300 = vshrl.u32 %v299, 7
    %v301 = vsub.s32 0, %v300
    %v302 = vrot.slane %v297, %v301
    %v304 = vadd.f32 %v294, %v302
    %v305 = vadd.f32 %v296, %v302
    %vm306 = vcmask 7168
    %307 = vst.msk [vmem:[%s9] sm:$0xff] %vm306, %v304
    %308 = vst.msk [vmem:[%s9 + $0x8] sm:$0xff] %vm306, %v305
    // Predicated region
    $region42: #{tpu_custom_call.1} parent=1 // pred_check
      _
    $region43: #{tpu_custom_call.1} parent=1 // pred_check_branch
      %310 = sbr.rel (0) target = $region45
    $region44: #{tpu_custom_call.1} parent=1 // pred_region
      _
    $region45: #{tpu_custom_call.1} parent=1 // pred_fallthru
      _
    // Predicated region
    $region46: #{tpu_custom_call.1} parent=1 // pred_check
      _
    $region47: #{tpu_custom_call.1} parent=1 // pred_check_branch
      %312 = sbr.rel (0) target = $region49
    $region48: #{tpu_custom_call.1} parent=1 // pred_region
      _
    $region49: #{tpu_custom_call.1} parent=1 // pred_fallthru
      _
    %313 = vsyncpa [#allocation4], 1

</llo_original>
